<compile_context>
chip_gen: v7x
topology: tpu7x:2x2x1
jax: 0.10.0
libtpu: 0.0.40
codegen_flags: <defaults>
</compile_context>

<pallas_src>
import jax
import jax.numpy as jnp
from jax import lax
from jax.experimental import pallas as pl
from jax.experimental.pallas import tpu as pltpu

_OUT_W = 8            # packed output lanes: [value, action, log_prob, pad x5]
_MAX_ROW_TILE = 512   # row-block cap (double-buffered tile fits v7x 64 MiB VMEM)


def _round_up(x, m):
    return (x + m - 1) // m * m


def _policy_head_kernel(feat_ref, w_ref, b_ref, out_ref):
    """Fused actor+critic head for one row tile.

    feat_ref: [TN, H]    features from the (abstract) net
    w_ref:    [H, A+1]   concat(actor weight [H,A], critic weight [H,1])
    b_ref:    [1, A+1]   concat(actor bias [1,A], critic bias [1,1])
    out_ref:  [TN, 8]    packed: col0=value, col1=action, col2=log_prob
    """
    feat = feat_ref[...]

    # Single MXU pass covers both heads (actor logits + critic value).
    fused = jnp.dot(feat, w_ref[...],
                    preferred_element_type=jnp.float32) + b_ref[...]

    a = w_ref.shape[1] - 1
    logits = fused[:, :a]                               # [TN, A]
    value = fused[:, a:a + 1]                           # [TN, 1]

    # Numerically stable log-softmax pieces.  The deterministic action is
    # argmax(logits); since z = logits - max == 0 at the argmax, the chosen
    # action's log-probability is exactly -log(sum(exp(z))).
    m = jnp.max(logits, axis=-1, keepdims=True)         # [TN, 1]
    z = logits - m
    lse = jnp.log(jnp.sum(jnp.exp(z), axis=-1, keepdims=True))
    logp = -lse                                         # [TN, 1]

    tn = feat_ref.shape[0]
    col = lax.broadcasted_iota(jnp.int32, (tn, a), 1)
    # First-occurrence argmax (matches torch/jnp argmax tie-breaking).
    action = jnp.min(jnp.where(logits >= m, col, a),
                     axis=-1, keepdims=True)            # [TN, 1] int32

    # Pack the three per-row scalars into one full-tile store.
    out_col = lax.broadcasted_iota(jnp.int32, (tn, _OUT_W), 1)
    packed = jnp.where(out_col == 0, value, 0.0)
    packed = jnp.where(out_col == 1, action.astype(jnp.float32), packed)
    packed = jnp.where(out_col == 2, logp, packed)
    out_ref[...] = packed


def policy_act(features, wa, ba, wc, bc,
               rnn_hidden_states=None, ext_memory_feats=None):
    """Policy.act(..., deterministic=True) head on TPU.

    features: [N, H] f32 (output of the abstract self.net)
    wa: [H, A] f32, ba: [1, A] f32   (CategoricalNet linear, stored transposed)
    wc: [H, 1] f32, bc: [1, 1] f32   (CriticHead linear, stored transposed)
    returns (value [N,1] f32, action [N,1] i32, action_log_probs [N,1] f32,
             rnn_hidden_states, ext_memory_feats)
    """
    n, h = features.shape
    a = wa.shape[1]

    # Fuse actor + critic so the kernel does a single matmul + bias add.
    w_fused = jnp.concatenate([wa, wc], axis=1)         # [H, A+1]
    b_fused = jnp.concatenate([ba, bc], axis=1)         # [1, A+1]

    tn = min(_MAX_ROW_TILE, _round_up(n, 8))
    n_pad = _round_up(n, tn)
    if n_pad != n:
        features = jnp.pad(features, ((0, n_pad - n), (0, 0)))

    packed = pl.pallas_call(
        _policy_head_kernel,
        out_shape=jax.ShapeDtypeStruct((n_pad, _OUT_W), jnp.float32),
        grid_spec=pltpu.PrefetchScalarGridSpec(
            num_scalar_prefetch=0,
            grid=(n_pad // tn,),
            in_specs=[
                pl.BlockSpec((tn, h), lambda i: (i, 0)),      # streamed rows
                pl.BlockSpec((h, a + 1), lambda i: (0, 0)),   # resident weight
                pl.BlockSpec((1, a + 1), lambda i: (0, 0)),   # resident bias
            ],
            out_specs=pl.BlockSpec((tn, _OUT_W), lambda i: (i, 0)),
        ),
        compiler_params=pltpu.CompilerParams(
            dimension_semantics=("parallel",)),
    )(features, w_fused, b_fused)

    packed = packed[:n]
    value = packed[:, 0:1]
    action = packed[:, 1:2].astype(jnp.int32)
    action_log_probs = packed[:, 2:3]
    # rnn_hidden_states / ext_memory_feats come from the abstract net and are
    # returned unchanged (see TODO above).
    return value, action, action_log_probs, rnn_hidden_states, ext_memory_feats


def _orthogonal(key, shape, gain=1.0):
    """Deterministic orthogonal init (matches nn.init.orthogonal_ semantics)."""
    rows, cols = shape
    flat = jax.random.normal(key, (max(rows, cols), min(rows, cols)),
                             dtype=jnp.float32)
    q, r = jnp.linalg.qr(flat)
    q = q * jnp.sign(jnp.diagonal(r))[None, :]
    if rows < cols:
        q = q.T
    return gain * q[:rows, :cols]


if __name__ == "__main__":
    N = 8            # batch of environments
    H = 32           # net.output_size (hidden feature size)
    A = 4            # dim_actions

    key = jax.random.PRNGKey(0)
    k_feat, k_wa, k_wc = jax.random.split(key, 3)

    # Features coming out of the (abstract) net.
    features = jax.random.normal(k_feat, (N, H), dtype=jnp.float32)

    # CategoricalNet: Linear(H, A), orthogonal init gain=0.01, bias=0.
    wa = _orthogonal(k_wa, (A, H), gain=0.01).T          # stored as [H, A]
    ba = jnp.zeros((1, A), dtype=jnp.float32)

    # CriticHead: Linear(H, 1), orthogonal init gain=1.0, bias=0.
    wc = _orthogonal(k_wc, (1, H), gain=1.0).T           # stored as [H, 1]
    bc = jnp.zeros((1, 1), dtype=jnp.float32)

    value, action, action_log_probs, _, _ = policy_act(features, wa, ba, wc, bc)
    jax.block_until_ready((value, action, action_log_probs))

    # Reference check in plain JAX (same semantics as the PyTorch module).
    ref_logits = features @ wa + ba
    ref_value = features @ wc + bc
    ref_logp_all = jax.nn.log_softmax(ref_logits, axis=-1)
    ref_action = jnp.argmax(ref_logits, axis=-1, keepdims=True)
    ref_logp = jnp.take_along_axis(ref_logp_all, ref_action, axis=-1)

    assert jnp.allclose(value, ref_value, atol=1e-5)
    assert jnp.all(action == ref_action.astype(jnp.int32))
    assert jnp.allclose(action_log_probs, ref_logp, atol=1e-5)

    print("KERNEL_OK")
</pallas_src>

<mosaic_0001>
module attributes {stable_mosaic.version = 11 : i64} {
  func.func @_policy_head_kernel(%arg0: i32, %arg1: memref<8x32xf32, #tpu.memory_space<vmem>>, %arg2: memref<32x5xf32, #tpu.memory_space<vmem>>, %arg3: memref<1x5xf32, #tpu.memory_space<vmem>>, %arg4: memref<8x8xf32, #tpu.memory_space<vmem>>) attributes {dimension_semantics = [#tpu.dimension_semantics<parallel>], iteration_bounds = array<i64: 1>, scalar_prefetch = 0 : i64, scratch_operands = 0 : i64, tpu.core_type = #tpu.core_type<tc>, window_params = [{transform_indices = @transform_0, window_bounds = array<i64: 8, 32>}, {pipeline_mode = #tpu.pipeline_mode<synchronous>, transform_indices = @transform_1, window_bounds = array<i64: 32, 5>}, {pipeline_mode = #tpu.pipeline_mode<synchronous>, transform_indices = @transform_2, window_bounds = array<i64: 1, 5>}, {transform_indices = @transform_3, window_bounds = array<i64: 8, 8>}]} {
    %c0 = arith.constant 0 : index
    %c0_0 = arith.constant 0 : index
    %0 = vector.load %arg1[%c0, %c0_0] : memref<8x32xf32, #tpu.memory_space<vmem>>, vector<8x32xf32>
    %c0_1 = arith.constant 0 : index
    %c0_2 = arith.constant 0 : index
    %1 = vector.load %arg2[%c0_1, %c0_2] : memref<32x5xf32, #tpu.memory_space<vmem>>, vector<32x5xf32>
    %cst = arith.constant dense<0.000000e+00> : vector<8x5xf32>
    %2 = tpu.matmul %0, %1, %cst {dimension_numbers = #tpu.dot_dimension_numbers<[1], [0], [0], [1], [0, 0, 1, 1], [], []>} : vector<8x32xf32>, vector<32x5xf32>, vector<8x5xf32> -> vector<8x5xf32>
    %c0_3 = arith.constant 0 : index
    %c0_4 = arith.constant 0 : index
    %3 = vector.load %arg3[%c0_3, %c0_4] : memref<1x5xf32, #tpu.memory_space<vmem>>, vector<1x5xf32>
    %4 = vector.broadcast %3 : vector<1x5xf32> to vector<8x5xf32>
    %5 = arith.addf %2, %4 : vector<8x5xf32>
    %6 = vector.extract_strided_slice %5 {offsets = [0, 0], sizes = [8, 4], strides = [1, 1]} : vector<8x5xf32> to vector<8x4xf32>
    %7 = vector.extract_strided_slice %5 {offsets = [0, 4], sizes = [8, 1], strides = [1, 1]} : vector<8x5xf32> to vector<8x1xf32>
    %cst_5 = arith.constant dense<0xFF800000> : vector<8xf32>
    %8 = vector.multi_reduction <maximumf>, %6, %cst_5 [1] : vector<8x4xf32> to vector<8xf32>
    %9 = vector.shape_cast %8 : vector<8xf32> to vector<8x1xf32>
    %10 = vector.broadcast %9 : vector<8x1xf32> to vector<8x4xf32>
    %11 = arith.subf %6, %10 : vector<8x4xf32>
    %12 = math.exp %11 : vector<8x4xf32>
    %cst_6 = arith.constant dense<0.000000e+00> : vector<8xf32>
    %13 = vector.multi_reduction <add>, %12, %cst_6 [1] : vector<8x4xf32> to vector<8xf32>
    %14 = vector.shape_cast %13 : vector<8xf32> to vector<8x1xf32>
    %15 = math.log %14 : vector<8x1xf32>
    %cst_7 = arith.constant 0.000000e+00 : f32
    %16 = vector.broadcast %cst_7 : f32 to vector<8x1xf32>
    %17 = arith.subf %16, %15 : vector<8x1xf32>
    %18 = tpu.iota {dimensions = array<i32: 1>} : vector<8x4xi32>
    %19 = vector.broadcast %9 : vector<8x1xf32> to vector<8x4xf32>
    %20 = arith.cmpf oge, %6, %19 : vector<8x4xf32>
    %c4_i32 = arith.constant 4 : i32
    %21 = vector.broadcast %c4_i32 : i32 to vector<8x4xi32>
    %22 = arith.select %20, %18, %21 : vector<8x4xi1>, vector<8x4xi32>
    %cst_8 = arith.constant dense<2147483647> : vector<8xi32>
    %23 = vector.multi_reduction <minsi>, %22, %cst_8 [1] : vector<8x4xi32> to vector<8xi32>
    %24 = vector.shape_cast %23 : vector<8xi32> to vector<8x1xi32>
    %25 = tpu.iota {dimensions = array<i32: 1>} : vector<8x8xi32>
    %c0_i32 = arith.constant 0 : i32
    %26 = vector.broadcast %c0_i32 : i32 to vector<8x8xi32>
    %27 = arith.cmpi eq, %25, %26 : vector<8x8xi32>
    %cst_9 = arith.constant 0.000000e+00 : f32
    %28 = vector.shape_cast %7 : vector<8x1xf32> to vector<8x1xf32>
    %29 = vector.broadcast %28 : vector<8x1xf32> to vector<8x8xf32>
    %30 = vector.broadcast %cst_9 : f32 to vector<8x8xf32>
    %31 = arith.select %27, %29, %30 : vector<8x8xi1>, vector<8x8xf32>
    %c1_i32 = arith.constant 1 : i32
    %32 = vector.broadcast %c1_i32 : i32 to vector<8x8xi32>
    %33 = arith.cmpi eq, %25, %32 : vector<8x8xi32>
    %34 = arith.sitofp %24 : vector<8x1xi32> to vector<8x1xf32>
    %35 = vector.shape_cast %34 : vector<8x1xf32> to vector<8x1xf32>
    %36 = vector.broadcast %35 : vector<8x1xf32> to vector<8x8xf32>
    %37 = arith.select %33, %36, %31 : vector<8x8xi1>, vector<8x8xf32>
    %c2_i32 = arith.constant 2 : i32
    %38 = vector.broadcast %c2_i32 : i32 to vector<8x8xi32>
    %39 = arith.cmpi eq, %25, %38 : vector<8x8xi32>
    %40 = vector.shape_cast %17 : vector<8x1xf32> to vector<8x1xf32>
    %41 = vector.broadcast %40 : vector<8x1xf32> to vector<8x8xf32>
    %42 = arith.select %39, %41, %37 : vector<8x8xi1>, vector<8x8xf32>
    %c0_10 = arith.constant 0 : index
    %c0_11 = arith.constant 0 : index
    %43 = vector.load %arg4[%c0_10, %c0_11] : memref<8x8xf32, #tpu.memory_space<vmem>>, vector<8x8xf32>
    tpu.vector_store %arg4[%c0_10, %c0_11], %42 {strides = array<i32>} : memref<8x8xf32, #tpu.memory_space<vmem>>, vector<8x8xf32>,
    return
  }
  func.func @transform_0(%arg0: i32) -> (i32, i32) {
    %c0_i32 = arith.constant 0 : i32
    %c0_i32_0 = arith.constant 0 : i32
    return %arg0, %c0_i32 : i32, i32
  }
  func.func @transform_1(%arg0: i32) -> (i32, i32) {
    %c0_i32 = arith.constant 0 : i32
    %c0_i32_0 = arith.constant 0 : i32
    %c0_i32_1 = arith.constant 0 : i32
    return %c0_i32, %c0_i32_0 : i32, i32
  }
  func.func @transform_2(%arg0: i32) -> (i32, i32) {
    %c0_i32 = arith.constant 0 : i32
    %c0_i32_0 = arith.constant 0 : i32
    %c0_i32_1 = arith.constant 0 : i32
    return %c0_i32, %c0_i32_0 : i32, i32
  }
  func.func @transform_3(%arg0: i32) -> (i32, i32) {
    %c0_i32 = arith.constant 0 : i32
    %c0_i32_0 = arith.constant 0 : i32
    return %arg0, %c0_i32 : i32, i32
  }
}

</mosaic_0001>

<llo_original>
// kernel: tpu_custom_call.1
$region0: #{tpu_custom_call.1}
  #allocation0 [shape = 'u32[]', space=smem, size = 0x4, offset = 0x4, fixed_abs, tag = 'smem constant byte address 0x4 - core index']
  #allocation1 [shape = 'u32[144,128]{1,0:T(1,128)}', space=vmem, size = 0x12000, scoped, tag = 'internal scratch']
  %s0 = inlined_call_operand.vmem [shape: f32[8,32], index: 0, kind: input, shape index: {}]
  %s1 = inlined_call_operand.vmem [shape: f32[32,5], index: 1, kind: input, shape index: {}]
  %s2 = inlined_call_operand.vmem [shape: f32[1,5], index: 2, kind: input, shape index: {}]
  %s3 = inlined_call_operand.hbm [shape: f32[8,8], index: 3, kind: output, shape index: {}]
  %s4 = sld [smem:[#allocation0]]
  $region22: #{tpu_custom_call.1} parent=0
    _
  %s6 = ssub.s32 1, %s4
  %s7 = scalar_select 0, %s6, %s4
  $region1: #{tpu_custom_call.1} parent=0
    #allocation2 [shape = 'u8[4096]{0}', space=vmem, size = 0x1000, scoped, tag = 'output window, operand 0, single buffered']
    #allocation3 [shape = 's32[1]{0}', space=sflag, size = 0x4, scoped, tag = 'scoped memory for tpu_custom_call.1']
    %8 = vsyncpa [#allocation3], 0
    // Predicated region
    $region2: #{tpu_custom_call.1} parent=1 // pred_check
      _
    $region3: #{tpu_custom_call.1} parent=1 // pred_check_branch
      %10 = sbr.rel (0) target = $region5
    $region4: #{tpu_custom_call.1} parent=1 // pred_region
      _
    $region5: #{tpu_custom_call.1} parent=1 // pred_fallthru
      _
    // Predicated region
    $region6: #{tpu_custom_call.1} parent=1 // pred_check
      _
    $region7: #{tpu_custom_call.1} parent=1 // pred_check_branch
      %12 = sbr.rel (0) target = $region9
    $region8: #{tpu_custom_call.1} parent=1 // pred_region
      _
    $region9: #{tpu_custom_call.1} parent=1 // pred_fallthru
      _
    // Predicated region
    $region10: #{tpu_custom_call.1} parent=1 // pred_check
      _
    $region11: #{tpu_custom_call.1} parent=1 // pred_check_branch
      %14 = sbr.rel (0) target = $region13
    $region12: #{tpu_custom_call.1} parent=1 // pred_region
      _
    $region13: #{tpu_custom_call.1} parent=1 // pred_fallthru
      _
    %v15 = vld [vmem:[%s0] sm:$0xff]
    %v16 = vld [vmem:[%s1] sm:$0xff]
    %v17 = vld [vmem:[%s1 + $0x8] sm:$0xff]
    %v18 = vld [vmem:[%s1 + $0x10] sm:$0xff]
    %v19 = vld [vmem:[%s1 + $0x18] sm:$0xff]
    %v20 = vld [vmem:[%s2] sm:$0x1]
    %v22 = vlaneseq
    %v23 = vshrl.u32 %v22, 7
    %v24 = vsub.s32 0, %v23
    %v25 = vrot.slane %v20, %v24
    %vm27 = vcmask 261120
    %v29 = vsel %vm27, %v15, 0
    %31 = vmatprep.subr.mxu0 0.0
    %32 = vmatpush1.msra.mxu0 %v16
    %33 = vmatprep.subr.mxu0 0.0
    %34 = vmatpush1.msra.mxu0 %v17
    %35 = vmatprep.subr.mxu0 0.0
    %36 = vmatpush1.msra.mxu0 %v18
    %37 = vmatprep.subr.mxu0 0.0
    %38 = vmatpush1.msra.mxu0 %v19
    %39 = vmatprep.subr.mxu0 0.0
    %40 = vmatpush1.msra.mxu0 0.0
    %41 = vmatprep.subr.mxu0 0.0
    %42 = vmatpush1.msra.mxu0 0.0
    %43 = vmatprep.subr.mxu0 0.0
    %44 = vmatpush1.msra.mxu0 0.0
    %45 = vmatprep.subr.mxu0 0.0
    %46 = vmatpush1.msra.mxu0 0.0
    %47 = vmatprep.subr.mxu0 0.0
    %48 = vmatpush1.msra.mxu0 0.0
    %49 = vmatprep.subr.mxu0 0.0
    %50 = vmatpush1.msra.mxu0 0.0
    %51 = vmatprep.subr.mxu0 0.0
    %52 = vmatpush1.msra.mxu0 0.0
    %53 = vmatprep.subr.mxu0 0.0
    %54 = vmatpush1.msra.mxu0 0.0
    %55 = vmatprep.subr.mxu0 0.0
    %56 = vmatpush1.msra.mxu0 0.0
    %57 = vmatprep.subr.mxu0 0.0
    %58 = vmatpush1.msra.mxu0 0.0
    %59 = vmatprep.subr.mxu0 0.0
    %60 = vmatpush1.msra.mxu0 0.0
    %61 = vmatprep.subr.mxu0 0.0
    %62 = vmatpush1.msra.mxu0 0.0
    %63 = vmatprep.subr.mxu0 0.0
    %64 = vmatpush1.msra.mxu0 0.0
    %65 = vmatprep.subr.mxu0 0.0
    %66 = vmatpush1.msra.mxu0 0.0
    %67 = vmatprep.subr.mxu0 0.0
    %68 = vmatpush1.msra.mxu0 0.0
    %69 = vmatprep.subr.mxu0 0.0
    %70 = vmatpush1.msra.mxu0 0.0
    %71 = vmatprep.subr.mxu0 0.0
    %72 = vmatpush1.msra.mxu0 0.0
    %73 = vmatprep.subr.mxu0 0.0
    %74 = vmatpush1.msra.mxu0 0.0
    %75 = vmatprep.subr.mxu0 0.0
    %76 = vmatpush1.msra.mxu0 0.0
    %77 = vmatprep.subr.mxu0 0.0
    %78 = vmatpush1.msra.mxu0 0.0
    %79 = vmatprep.subr.mxu0 0.0
    %80 = vmatpush1.msra.mxu0 0.0
    %81 = vmatprep.subr.mxu0 0.0
    %82 = vmatpush1.msra.mxu0 0.0
    %83 = vmatprep.subr.mxu0 0.0
    %84 = vmatpush1.msra.mxu0 0.0
    %85 = vmatprep.subr.mxu0 0.0
    %86 = vmatpush1.msra.mxu0 0.0
    %87 = vmatprep.subr.mxu0 0.0
    %88 = vmatpush1.msra.mxu0 0.0
    %89 = vmatprep.subr.mxu0 0.0
    %90 = vmatpush1.msra.mxu0 0.0
    %91 = vmatprep.subr.mxu0 0.0
    %92 = vmatpush1.msra.mxu0 0.0
    %93 = vmatprep.subr.mxu0 0.0
    %94 = vmatpush1.msra.mxu0 0.0
    %95 = vmatprep.mubr.f32.mxu0 0.0
    %96 = vmatmul.mubr.f32.gmra.mrb[0].mxu0 %v29
    %v97 = vpop.f32.mrb[0].mxu0
    %v98 = vadd.f32 %v25, %v97
    %v99 = vpop.f32.mrb[0].mxu0
    %100 = vdwg.mxu0
    %vm101 = vcmask 31744
    %v102 = vsel %vm101, %v98, -inf
    %103 = vmax.xlane.f32.xlu0 %v102
    %v104 = vpop.xlane.xlu0 %103
    %v105 = vsub.f32 %v98, %v104
    %v106 = vmul.f32 %v105, 1.442695
    %v107 = vpow.pop %v106
    %v108 = vsel %vm101, %v107, 0.0
    %109 = vadd.xlane.f32.xlu0 %v108
    %v110 = vpop.xlane.xlu0 %109
    %v111 = vlog2.pop %v110
    %v112 = vmul.f32 %v111, 0.6931472
    %v113 = vsub.f32 0.0, %v112
    %v114 = vlaneseq
    %v115 = vand.u32 %v114, 127
    %vm116 = vcmp.ge.f32.partialorder %v98, %v104
    %v117 = vsel %vm116, %v115, 4
    %v118 = vsel %vm101, %v117, 2147483647
    %v119 = vand.u32 %v118, 65535
    %v120 = vshra.s32 %v118, 16
    %v121 = vcvt.s32.f32 %v119
    %v122 = vcvt.s32.f32 %v120
    %123 = vmin.xlane.f32.xlu0 %v122
    %v124 = vpop.xlane.xlu0 %123
    %vm125 = vcmp.eq.f32.partialorder %v122, %v124
    %v126 = vsel %vm125, %v121, inf
    %127 = vmin.xlane.f32.xlu0 %v126
    %v128 = vpop.xlane.xlu0 %127
    %v129 = vcvt.f32.s32 %v128
    %v130 = vcvt.f32.s32 %v124
    %v131 = vshll.u32 %v130, 16
    %v132 = vadd.s32 %v131, %v129
    %vm133 = vcmp.eq.s32.totalorder %v115, 0
    %135 = vset.pattern.permute.xlu0 4
    %136 = vperm.xlu0 %135, %v98
    %v137 = vpop.permute.xlu0 %136
    %v139 = vsel %vm133, %v137, 0.0
    %vm140 = vcmp.eq.s32.totalorder %v115, 1
    %v141 = vcvt.s32.f32 %v132
    %v142 = vsel %vm140, %v141, %v139
    %vm143 = vcmp.eq.s32.totalorder %v115, 2
    %v144 = vsel %vm143, %v113, %v142
    %vm145 = vcmask 64512
    %146 = vst.msk [vmem:[#allocation2] sm:$0xff] %vm145, %v144
    // Predicated region
    $region14: #{tpu_custom_call.1} parent=1 // pred_check
      _
    $region15: #{tpu_custom_call.1} parent=1 // pred_check_branch
      %148 = sbr.rel (0) target = $region17
    $region16: #{tpu_custom_call.1} parent=1 // pred_region
      %s150 = ssub.s32 128, 128
      %151 = vsyncadd [#allocation3], %s150
      %s153 = sshll.u32 [#allocation2], 4
      %s154 = int_to_ptr.vmem [resolvable:$true] %s153
      %156 = dma.vmem_to_hbm [thread:$0]  %s154, 128, %s3, [#allocation3]
    $region17: #{tpu_custom_call.1} parent=1 // pred_fallthru
      _
    // Predicated region
    $region18: #{tpu_custom_call.1} parent=1 // pred_check
      _
    $region19: #{tpu_custom_call.1} parent=1 // pred_check_branch
      %158 = sbr.rel (0) target = $region21
    $region20: #{tpu_custom_call.1} parent=1 // pred_region
      %159 = dma.done [#allocation3], 128
    $region21: #{tpu_custom_call.1} parent=1 // pred_fallthru
      _
    %160 = vsyncpa [#allocation3], 1

</llo_original>
